<compile_context>
chip_gen: v6e
topology: v6e:2x2x1
jax: 0.10.0
libtpu: 0.0.40
codegen_flags: <defaults>
</compile_context>

<pallas_src>
import functools

import jax
import jax.numpy as jnp
from jax import lax
from jax.experimental import pallas as pl
from jax.experimental.pallas import tpu as pltpu


# ----------------------------------------------------------------------------
# Pallas kernel
# ----------------------------------------------------------------------------
def _temporal_conv_kernel(x_ref, w_ref, b_ref, out_ref, *, Kt, n_vertex, c_out,
                          act_func, compute_dtype):
    # x_ref  : (bb, c_in, T*V)        input block (NCHW with T,V flattened on lanes)
    # w_ref  : (Kt, n_gate, c_in)     per-tap weights (Align already folded, compute dtype)
    # b_ref  : (n_gate, 1)            folded bias (f32)
    # out_ref: (bb, c_out, T_out*V)   lane-dense output block
    bb = x_ref.shape[0]
    V = n_vertex
    ToV = out_ref.shape[2]
    n_gate = b_ref.shape[0]

    w = w_ref[...]                                        # hoisted: once per grid step
    bias = jnp.broadcast_to(b_ref[...], (n_gate, ToV))    # hoisted out of the batch loop

    def body(b, carry):
        xb = x_ref[b].astype(compute_dtype)               # (c_in, T*V), cast in VMEM

        # Causal conv: tap k reads x time-shifted by k steps (k*V lanes).
        # Shift the RHS (c_in rows) and accumulate each tap's matmul in f32 —
        # the live intermediate is a single (n_gate, ToV) accumulator.
        acc = bias
        for k in range(Kt):                               # Kt is tiny (2-3): static unroll
            xk = xb[:, k * V:k * V + ToV]                 # (c_in, ToV)
            acc = acc + jnp.dot(w[k], xk, preferred_element_type=jnp.float32)

        if act_func == "glu":
            y = acc[:c_out] * jax.nn.sigmoid(acc[c_out:])
        elif act_func == "gtu":
            y = jnp.tanh(acc[:c_out]) * jax.nn.sigmoid(acc[c_out:])
        elif act_func == "relu":
            y = jnp.maximum(acc, 0.0)
        elif act_func == "leaky_relu":
            y = jnp.where(acc >= 0, acc, 0.01 * acc)      # nn.LeakyReLU default slope
        elif act_func == "silu":
            y = acc * jax.nn.sigmoid(acc)
        else:
            raise NotImplementedError(f"activation {act_func} not implemented")

        out_ref[b] = y.astype(out_ref.dtype)
        return carry

    lax.fori_loop(0, bb, body, 0)


# ----------------------------------------------------------------------------
# Parameter preparation (Align fold + per-tap stacking), all in f32
# ----------------------------------------------------------------------------
def prepare_params(conv_w, conv_b, align_w, align_b, *, Kt, c_out, act_func,
                   compute_dtype=jnp.float32):
    """conv_w: (Kt, c_in, n_gate)  [torch weight[co,ci,k,0] -> conv_w[k,ci,co]]
       align_w: (c_in, c_out), align_b: (c_out,)  (folded Align module)."""
    conv_w = conv_w.astype(jnp.float32)
    conv_b = conv_b.astype(jnp.float32)
    align_w = align_w.astype(jnp.float32)
    align_b = align_b.astype(jnp.float32)

    # Align(x)[:, :, Kt-1:, :] is linear and time-aligned with the last tap, so
    # fold it into conv_w[Kt-1] / conv_b (exact, in f32).  NOTE: with a bf16
    # compute_dtype the folded residual is then quantized to bf16; use
    # compute_dtype=float32 if exact parity with the PyTorch f32 add matters.
    if act_func in ("glu", "gtu"):
        conv_w = conv_w.at[Kt - 1, :, :c_out].add(align_w)   # only the "p" half
        conv_b = conv_b.at[:c_out].add(align_b)
    else:
        conv_w = conv_w.at[Kt - 1].add(align_w)
        conv_b = conv_b + align_b

    # (Kt, c_in, n_gate) -> (Kt, n_gate, c_in): one MXU LHS per causal tap.
    w_taps = jnp.transpose(conv_w, (0, 2, 1)).astype(compute_dtype)
    b_col = conv_b.reshape(-1, 1)                            # stays f32 (post-matmul add)
    return w_taps, b_col


# ----------------------------------------------------------------------------
# VMEM / batch-block sizing
# ----------------------------------------------------------------------------
def _vmem_config():
    """(vmem_limit_bytes, batch-block budget) sized to the current TPU generation."""
    try:
        phys = int(getattr(pltpu.get_tpu_info(), "vmem_capacity_bytes", 0)) or (128 << 20)
    except Exception:
        phys = 128 << 20
    # v5e/v6e (128 MiB): limit 96 MiB, budget 48 MiB.  v7x (64 MiB): 48 / 24 MiB.
    limit = int(min(100 << 20, phys * 3 // 4))
    budget = limit // 2
    return limit, budget


def _default_batch_block(B, c_in, n_gate, c_out, T, V, Kt,
                         in_itemsize, out_itemsize, compute_itemsize,
                         vmem_budget_bytes):
    """Largest batch block (divisor of B) that fits the budget AND keeps >=2 grid steps."""
    def rup(n, m):
        return -(-n // m) * m
    TV, ToV = T * V, (T - Kt + 1) * V
    # Pipelined (double-buffered) HBM<->VMEM blocks, per batch element.
    per_b = (2 * rup(c_in, 8) * rup(TV, 128) * in_itemsize
             + 2 * rup(c_out, 8) * rup(ToV, 128) * out_itemsize)
    # Loop-body intermediates — live for a single batch element (fori_loop).
    fixed = (rup(c_in, 8) * rup(TV, 128) * compute_itemsize        # xb cast copy
             + rup(c_in, 8) * rup(ToV, 128) * compute_itemsize     # shifted tap slice
             + 3 * rup(n_gate, 8) * rup(ToV, 128) * 4)             # acc + tap out + bias
    avail = max(vmem_budget_bytes - fixed, per_b)
    bb = int(max(1, min(B, avail // max(per_b, 1))))
    # Never collapse to grid=(1,): keep >=2 steps (>=4 when B allows) so
    # double-buffering overlaps DMA and v7x can shard across its 2 TensorCores.
    min_steps = 4 if B >= 4 else (2 if B >= 2 else 1)
    bb = min(bb, max(1, B // min_steps))
    while B % bb:
        bb -= 1
    return bb


# ----------------------------------------------------------------------------
# Wrapper
# ----------------------------------------------------------------------------
def temporal_conv_layer(x_nchw, conv_w, conv_b, align_w, align_b, *, Kt, c_out,
                        act_func, compute_dtype=jnp.bfloat16, out_dtype=None,
                        batch_block=None):
    """x_nchw: (B, C_in, T, V) (PyTorch NCHW).  Returns (B, C_out, T-Kt+1, V)."""
    B, c_in, T, V = x_nchw.shape
    T_out = T - Kt + 1
    n_gate = conv_w.shape[-1]
    compute_dtype = jnp.dtype(compute_dtype if compute_dtype is not None
                              else x_nchw.dtype)
    out_dtype = jnp.dtype(out_dtype if out_dtype is not None else x_nchw.dtype)

    w_taps, b_col = prepare_params(conv_w, conv_b, align_w, align_b,
                                   Kt=Kt, c_out=c_out, act_func=act_func,
                                   compute_dtype=compute_dtype)

    # Free view: keep NCHW, merge (T, V) onto the lane axis.  NO wrapper-side
    # dtype cast of x (that would be an extra HBM round trip); the kernel casts
    # to compute_dtype inside VMEM.
    x2 = x_nchw.reshape(B, c_in, T * V)
    in_itemsize = jnp.dtype(x2.dtype).itemsize

    vmem_limit, vmem_budget = _vmem_config()
    bb = (batch_block if batch_block is not None else
          _default_batch_block(B, c_in, n_gate, c_out, T, V, Kt,
                               in_itemsize, out_dtype.itemsize,
                               compute_dtype.itemsize, vmem_budget))
    assert B % bb == 0, (B, bb)

    # Advisory cost for the XLA scheduler.
    flops = 2 * B * Kt * n_gate * c_in * T_out * V
    if act_func in ("glu", "silu"):
        transcendentals = B * c_out * T_out * V
    elif act_func == "gtu":
        transcendentals = 2 * B * c_out * T_out * V
    else:
        transcendentals = 0
    bytes_accessed = (x2.size * in_itemsize
                      + w_taps.size * jnp.dtype(w_taps.dtype).itemsize
                      + b_col.size * 4
                      + B * c_out * T_out * V * out_dtype.itemsize)
    cost = pl.CostEstimate(flops=int(flops), transcendentals=int(transcendentals),
                           bytes_accessed=int(bytes_accessed))

    out3 = pl.pallas_call(
        functools.partial(_temporal_conv_kernel, Kt=Kt, n_vertex=V, c_out=c_out,
                          act_func=act_func, compute_dtype=compute_dtype),
        out_shape=jax.ShapeDtypeStruct((B, c_out, T_out * V), out_dtype),
        grid_spec=pltpu.PrefetchScalarGridSpec(
            num_scalar_prefetch=0,
            grid=(B // bb,),
            in_specs=[
                pl.BlockSpec((bb, c_in, T * V), lambda i: (i, 0, 0)),
                pl.BlockSpec((Kt, n_gate, c_in), lambda i: (0, 0, 0)),
                pl.BlockSpec((n_gate, 1), lambda i: (0, 0)),
            ],
            out_specs=pl.BlockSpec((bb, c_out, T_out * V), lambda i: (i, 0, 0)),
        ),
        compiler_params=pltpu.CompilerParams(
            dimension_semantics=("parallel",),
            vmem_limit_bytes=vmem_limit),
        cost_estimate=cost,
    )(x2, w_taps, b_col)

    # Free view back to the NCHW output shape.
    return out3.reshape(B, c_out, T_out, V)


def make_align_params(c_in, c_out, key):
    """Fold the Align module into a single (C_in, C_out) matrix + bias."""
    if c_in > c_out:
        kw, kb = jax.random.split(key)
        A = 0.1 * jax.random.normal(kw, (c_in, c_out), jnp.float32)
        ab = 0.1 * jax.random.normal(kb, (c_out,), jnp.float32)
    elif c_in < c_out:
        A = jnp.zeros((c_in, c_out), jnp.float32)
        A = A.at[jnp.arange(c_in), jnp.arange(c_in)].set(1.0)   # zero-pad channels
        ab = jnp.zeros((c_out,), jnp.float32)
    else:
        A = jnp.eye(c_in, dtype=jnp.float32)
        ab = jnp.zeros((c_out,), jnp.float32)
    return A, ab


# ----------------------------------------------------------------------------
# Pure-JAX reference (original, unfused math) for verification
# ----------------------------------------------------------------------------
def reference(x_nchw, conv_w, conv_b, align_w, align_b, *, Kt, c_out, act_func):
    x = x_nchw.astype(jnp.float32)
    B, c_in, T, V = x.shape
    T_out = T - Kt + 1

    acc = jnp.zeros((B, conv_w.shape[-1], T_out, V), jnp.float32)
    for k in range(Kt):
        acc = acc + jnp.einsum("bctv,cd->bdtv", x[:, :, k:k + T_out, :], conv_w[k])
    acc = acc + conv_b[None, :, None, None]

    x_in = (jnp.einsum("bctv,cd->bdtv", x[:, :, Kt - 1:, :], align_w)
            + align_b[None, :, None, None])

    if act_func == "glu":
        y = (acc[:, :c_out] + x_in) * jax.nn.sigmoid(acc[:, c_out:])
    elif act_func == "gtu":
        y = jnp.tanh(acc[:, :c_out] + x_in) * jax.nn.sigmoid(acc[:, c_out:])
    elif act_func == "relu":
        y = jnp.maximum(acc + x_in, 0.0)
    elif act_func == "leaky_relu":
        z = acc + x_in
        y = jnp.where(z >= 0, z, 0.01 * z)
    elif act_func == "silu":
        z = acc + x_in
        y = z * jax.nn.sigmoid(z)
    else:
        raise NotImplementedError(act_func)
    return y


# ----------------------------------------------------------------------------
if __name__ == "__main__":
    def run_case(B, C_IN, T, V, KT, C_OUT, act, tol, key, **kw):
        n_gate = 2 * C_OUT if act in ("glu", "gtu") else C_OUT
        k_x, k_w, k_b, k_a = jax.random.split(key, 4)
        x = jax.random.normal(k_x, (B, C_IN, T, V), jnp.float32)
        # conv_w[k, ci, co]  <->  torch conv weight[co, ci, k, 0]
        conv_w = 0.1 * jax.random.normal(k_w, (KT, C_IN, n_gate), jnp.float32)
        conv_b = 0.1 * jax.random.normal(k_b, (n_gate,), jnp.float32)
        align_w, align_b = make_align_params(C_IN, C_OUT, k_a)

        out = temporal_conv_layer(x, conv_w, conv_b, align_w, align_b,
                                  Kt=KT, c_out=C_OUT, act_func=act, **kw)
        out = jax.block_until_ready(out)
        ref = reference(x, conv_w, conv_b, align_w, align_b,
                        Kt=KT, c_out=C_OUT, act_func=act)

        assert out.shape == (B, C_OUT, T - KT + 1, V), out.shape
        err = float(jnp.max(jnp.abs(out.astype(jnp.float32) - ref)))
        assert err <= tol, (act, err)

    key = jax.random.PRNGKey(0)
    k1, k2, k3 = jax.random.split(key, 3)

    # gated path (c_in < c_out -> zero-pad Align), exact f32 compute,
    # batch_block=2 exercises the in-kernel fori_loop with bb > 1 (grid = 2 steps)
    run_case(4, 4, 16, 16, 3, 8, "glu", 2e-5, k1,
             compute_dtype=jnp.float32, batch_block=2)
    # non-gated fold path, exact f32 compute, default block sizing (grid = 2 steps)
    run_case(2, 4, 16, 16, 3, 8, "relu", 2e-5, k2, compute_dtype=jnp.float32)
    # gated path with 1x1-conv Align (c_in > c_out), default bf16 matmul inputs
    run_case(2, 16, 16, 16, 3, 8, "gtu", 5e-2, k3)

    print("KERNEL_OK")
</pallas_src>

<mosaic_0001>
module attributes {stable_mosaic.version = 11 : i64} {
  func.func @_temporal_conv_kernel(%arg0: i32, %arg1: memref<2x4x256xf32, #tpu.memory_space<vmem>>, %arg2: memref<3x16x4xf32, #tpu.memory_space<vmem>>, %arg3: memref<16x1xf32, #tpu.memory_space<vmem>>, %arg4: memref<2x8x224xf32, #tpu.memory_space<vmem>>) attributes {dimension_semantics = [#tpu.dimension_semantics<parallel>], iteration_bounds = array<i64: 2>, scalar_prefetch = 0 : i64, scratch_operands = 0 : i64, tpu.core_type = #tpu.core_type<tc>, window_params = [{transform_indices = @transform_0, window_bounds = array<i64: 2, 4, 256>}, {pipeline_mode = #tpu.pipeline_mode<synchronous>, transform_indices = @transform_1, window_bounds = array<i64: 3, 16, 4>}, {pipeline_mode = #tpu.pipeline_mode<synchronous>, transform_indices = @transform_2, window_bounds = array<i64: 16, 1>}, {transform_indices = @transform_3, window_bounds = array<i64: 2, 8, 224>}]} {
    %c0 = arith.constant 0 : index
    %c0_0 = arith.constant 0 : index
    %c0_1 = arith.constant 0 : index
    %0 = vector.load %arg2[%c0, %c0_0, %c0_1] : memref<3x16x4xf32, #tpu.memory_space<vmem>>, vector<3x16x4xf32>
    %c0_2 = arith.constant 0 : index
    %c0_3 = arith.constant 0 : index
    %1 = vector.load %arg3[%c0_2, %c0_3] : memref<16x1xf32, #tpu.memory_space<vmem>>, vector<16x1xf32>
    %2 = vector.shape_cast %1 : vector<16x1xf32> to vector<16x1xf32>
    %3 = vector.broadcast %2 : vector<16x1xf32> to vector<16x224xf32>
    %c0_i32 = arith.constant 0 : i32
    %c2_i32 = arith.constant 2 : i32
    %4 = arith.addi %c0_i32, %c2_i32 : i32
    %c1_i32 = arith.constant 1 : i32
    scf.for %arg5 = %c0_i32 to %4 step %c1_i32  : i32 {
      %5 = arith.index_cast %arg5 : i32 to index
      %c0_5 = arith.constant 0 : index
      %c0_6 = arith.constant 0 : index
      %6 = vector.load %arg1[%5, %c0_5, %c0_6] : memref<2x4x256xf32, #tpu.memory_space<vmem>>, vector<1x4x256xf32>
      %7 = vector.shape_cast %6 : vector<1x4x256xf32> to vector<4x256xf32>
      %8 = vector.extract_strided_slice %7 {offsets = [0, 0], sizes = [4, 224], strides = [1, 1]} : vector<4x256xf32> to vector<4x224xf32>
      %9 = vector.extract_strided_slice %0 {offsets = [0, 0, 0], sizes = [1, 16, 4], strides = [1, 1, 1]} : vector<3x16x4xf32> to vector<1x16x4xf32>
      %10 = vector.shape_cast %9 : vector<1x16x4xf32> to vector<16x4xf32>
      %cst = arith.constant dense<0.000000e+00> : vector<16x224xf32>
      %11 = tpu.matmul %10, %8, %cst {dimension_numbers = #tpu.dot_dimension_numbers<[1], [0], [0], [1], [0, 0, 1, 1], [], []>} : vector<16x4xf32>, vector<4x224xf32>, vector<16x224xf32> -> vector<16x224xf32>
      %12 = arith.addf %3, %11 : vector<16x224xf32>
      %13 = vector.extract_strided_slice %7 {offsets = [0, 16], sizes = [4, 224], strides = [1, 1]} : vector<4x256xf32> to vector<4x224xf32>
      %14 = vector.extract_strided_slice %0 {offsets = [1, 0, 0], sizes = [1, 16, 4], strides = [1, 1, 1]} : vector<3x16x4xf32> to vector<1x16x4xf32>
      %15 = vector.shape_cast %14 : vector<1x16x4xf32> to vector<16x4xf32>
      %cst_7 = arith.constant dense<0.000000e+00> : vector<16x224xf32>
      %16 = tpu.matmul %15, %13, %cst_7 {dimension_numbers = #tpu.dot_dimension_numbers<[1], [0], [0], [1], [0, 0, 1, 1], [], []>} : vector<16x4xf32>, vector<4x224xf32>, vector<16x224xf32> -> vector<16x224xf32>
      %17 = arith.addf %12, %16 : vector<16x224xf32>
      %18 = vector.extract_strided_slice %7 {offsets = [0, 32], sizes = [4, 224], strides = [1, 1]} : vector<4x256xf32> to vector<4x224xf32>
      %19 = vector.extract_strided_slice %0 {offsets = [2, 0, 0], sizes = [1, 16, 4], strides = [1, 1, 1]} : vector<3x16x4xf32> to vector<1x16x4xf32>
      %20 = vector.shape_cast %19 : vector<1x16x4xf32> to vector<16x4xf32>
      %cst_8 = arith.constant dense<0.000000e+00> : vector<16x224xf32>
      %21 = tpu.matmul %20, %18, %cst_8 {dimension_numbers = #tpu.dot_dimension_numbers<[1], [0], [0], [1], [0, 0, 1, 1], [], []>} : vector<16x4xf32>, vector<4x224xf32>, vector<16x224xf32> -> vector<16x224xf32>
      %22 = arith.addf %17, %21 : vector<16x224xf32>
      %23 = vector.extract_strided_slice %22 {offsets = [0, 0], sizes = [8, 224], strides = [1, 1]} : vector<16x224xf32> to vector<8x224xf32>
      %24 = vector.extract_strided_slice %22 {offsets = [8, 0], sizes = [8, 224], strides = [1, 1]} : vector<16x224xf32> to vector<8x224xf32>
      %25 = arith.negf %24 : vector<8x224xf32>
      %26 = math.exp %25 : vector<8x224xf32>
      %cst_9 = arith.constant 1.000000e+00 : f32
      %27 = vector.broadcast %cst_9 : f32 to vector<8x224xf32>
      %28 = arith.addf %27, %26 : vector<8x224xf32>
      %29 = arith.divf %27, %28 : vector<8x224xf32>
      %30 = arith.mulf %23, %29 : vector<8x224xf32>
      %31 = arith.index_cast %arg5 : i32 to index
      %c0_10 = arith.constant 0 : index
      %c0_11 = arith.constant 0 : index
      %32 = vector.load %arg4[%31, %c0_10, %c0_11] : memref<2x8x224xf32, #tpu.memory_space<vmem>>, vector<1x8x224xf32>
      %33 = vector.shape_cast %32 : vector<1x8x224xf32> to vector<8x224xf32>
      %34 = vector.shape_cast %30 : vector<8x224xf32> to vector<1x8x224xf32>
      tpu.vector_store %arg4[%31, %c0_10, %c0_11], %34 {strides = array<i32>} : memref<2x8x224xf32, #tpu.memory_space<vmem>>, vector<1x8x224xf32>,
    }
    %c2_i32_4 = arith.constant 2 : i32
    return
  }
  func.func @transform_0(%arg0: i32) -> (i32, i32, i32) {
    %c0_i32 = arith.constant 0 : i32
    %c0_i32_0 = arith.constant 0 : i32
    %c0_i32_1 = arith.constant 0 : i32
    return %arg0, %c0_i32, %c0_i32_0 : i32, i32, i32
  }
  func.func @transform_1(%arg0: i32) -> (i32, i32, i32) {
    %c0_i32 = arith.constant 0 : i32
    %c0_i32_0 = arith.constant 0 : i32
    %c0_i32_1 = arith.constant 0 : i32
    %c0_i32_2 = arith.constant 0 : i32
    return %c0_i32, %c0_i32_0, %c0_i32_1 : i32, i32, i32
  }
  func.func @transform_2(%arg0: i32) -> (i32, i32) {
    %c0_i32 = arith.constant 0 : i32
    %c0_i32_0 = arith.constant 0 : i32
    %c0_i32_1 = arith.constant 0 : i32
    return %c0_i32, %c0_i32_0 : i32, i32
  }
  func.func @transform_3(%arg0: i32) -> (i32, i32, i32) {
    %c0_i32 = arith.constant 0 : i32
    %c0_i32_0 = arith.constant 0 : i32
    %c0_i32_1 = arith.constant 0 : i32
    return %arg0, %c0_i32, %c0_i32_0 : i32, i32, i32
  }
}

</mosaic_0001>

<llo_original>
// kernel: tpu_custom_call.1
$region0: #{tpu_custom_call.1}
  #allocation0 [shape = 'u32[]', space=smem, size = 0x4, offset = 0x4, fixed_abs, tag = 'smem constant byte address 0x4 - core index']
  #allocation1 [shape = 'u32[144,128]{1,0:T(1,128)}', space=vmem, size = 0x12000, scoped, tag = 'internal scratch']
  %s0 = inlined_call_operand.vmem [shape: f32[4,4,256], index: 0, kind: input, shape index: {}]
  %s1 = inlined_call_operand.vmem [shape: f32[3,16,4], index: 1, kind: input, shape index: {}]
  %s2 = inlined_call_operand.vmem [shape: f32[16,1], index: 2, kind: input, shape index: {}]
  %s3 = inlined_call_operand.hbm [shape: f32[4,8,224], index: 3, kind: output, shape index: {}]
  %s4 = sld [smem:[#allocation0]]
  $region52: #{tpu_custom_call.1} parent=0
    _
  %s6 = ssub.s32 1, %s4
  %s7 = scalar_select 0, %s6, %s4
  $region1: #{tpu_custom_call.1} parent=0
    #allocation2 [shape = 'u8[32768]{0}', space=vmem, size = 0x8000, scoped, tag = 'output window, operand 0']
    #allocation3 [shape = 's32[2]{0}', space=sflag, size = 0x8, scoped, tag = 'scoped memory for tpu_custom_call.1']
    %8 = vsyncpa [#allocation3], 0
    %s9 = scalar_lea.sflag [#allocation3], 1
    %10 = vsyncpa %s9, 0
    loop: start=0, step=1, limit=4
    $region2: #{tpu_custom_call.1} parent=1 // loop_pre_header
      _
    $region3: #{tpu_custom_call.1} parent=1 // loop_header
      %s12 = sphi 0, %s16
      %p13 = scmp.ge.s32.totalorder %s12, 4
      %s22 = sphi 0, %s24
      %s25 = sphi 0, %s22
      %s26 = sphi 0, %s25
      %s42 = sphi 0, %s26
      %s46 = sphi 0, %s46
      %s48 = sphi 0, %s46
      %s49 = sphi 0, %s48
      %s63 = sphi 0, %s49
      %s67 = sphi 0, %s67
      %s69 = sphi 0, %s67
      %s70 = sphi 0, %s69
      %s84 = sphi 0, %s70
      %s90 = sphi 0, %s92
      %s93 = sphi 0, %s90
      %s94 = sphi 0, %s93
      %s110 = sphi 0, %s94
    $region4: #{tpu_custom_call.1} parent=1 // loop_header_branch
      %15 = sbr.rel (%p13) target = $region8
    $region5: #{tpu_custom_call.1} parent=1 // loop_body
      %s17 = ssub.s32 %s12, 1
      %s18 = ssub.s32 %s12, 2
      %s19 = sadd.s32 %s12, 1
      %s20 = ssub.s32 %s12, %s19
      %p21 = scmp.eq.s32.totalorder %s20, 0
      %s23 = sadd.s32 %s22, 1
      %s24 = scalar_select %p21, %s22, %s23
      %p27 = pneg %p21
      %p28 = scmp.eq.s32.totalorder %s12, 1
      %p29 = por %p27, %p28
      %p30 = scmp.ne.s32.totalorder %s22, %s25
      %p31 = scmp.eq.s32.totalorder %s12, 0
      %p32 = por %p30, %p31
      %p33 = scmp.ne.s32.totalorder %s22, %s25
      %p34 = scmp.eq.s32.totalorder %s17, 1
      %p35 = por %p33, %p34
      %p36 = scmp.ne.s32.totalorder %s25, %s26
      %p37 = scmp.eq.s32.totalorder %s17, 0
      %p38 = por %p36, %p37
      %p39 = scmp.ne.s32.totalorder %s25, %s26
      %p40 = scmp.eq.s32.totalorder %s18, 1
      %p41 = por %p39, %p40
      %p43 = scmp.ne.s32.totalorder %s26, %s42
      %p44 = scmp.eq.s32.totalorder %s18, 0
      %p45 = por %p43, %p44
      %s47 = sadd.s32 %s46, 1
      %p50 = scmp.eq.s32.totalorder %s12, 1
      %p51 = scmp.ne.s32.totalorder %s46, %s48
      %p52 = scmp.eq.s32.totalorder %s12, 0
      %p53 = por %p51, %p52
      %p54 = scmp.ne.s32.totalorder %s46, %s48
      %p55 = scmp.eq.s32.totalorder %s17, 1
      %p56 = por %p54, %p55
      %p57 = scmp.ne.s32.totalorder %s48, %s49
      %p58 = scmp.eq.s32.totalorder %s17, 0
      %p59 = por %p57, %p58
      %p60 = scmp.ne.s32.totalorder %s48, %s49
      %p61 = scmp.eq.s32.totalorder %s18, 1
      %p62 = por %p60, %p61
      %p64 = scmp.ne.s32.totalorder %s49, %s63
      %p65 = scmp.eq.s32.totalorder %s18, 0
      %p66 = por %p64, %p65
      %s68 = sadd.s32 %s67, 1
      %p71 = scmp.eq.s32.totalorder %s12, 1
      %p72 = scmp.ne.s32.totalorder %s67, %s69
      %p73 = scmp.eq.s32.totalorder %s12, 0
      %p74 = por %p72, %p73
      %p75 = scmp.ne.s32.totalorder %s67, %s69
      %p76 = scmp.eq.s32.totalorder %s17, 1
      %p77 = por %p75, %p76
      %p78 = scmp.ne.s32.totalorder %s69, %s70
      %p79 = scmp.eq.s32.totalorder %s17, 0
      %p80 = por %p78, %p79
      %p81 = scmp.ne.s32.totalorder %s69, %s70
      %p82 = scmp.eq.s32.totalorder %s18, 1
      %p83 = por %p81, %p82
      %p85 = scmp.ne.s32.totalorder %s70, %s84
      %p86 = scmp.eq.s32.totalorder %s18, 0
      %p87 = por %p85, %p86
      %s88 = ssub.s32 %s12, %s19
      %p89 = scmp.eq.s32.totalorder %s88, 0
      %s91 = sadd.s32 %s90, 1
      %s92 = scalar_select %p89, %s90, %s91
      %p95 = pneg %p89
      %p96 = scmp.eq.s32.totalorder %s12, 1
      %p97 = por %p95, %p96
      %p98 = scmp.ne.s32.totalorder %s90, %s93
      %p99 = scmp.eq.s32.totalorder %s12, 0
      %p100 = por %p98, %p99
      %p101 = scmp.ne.s32.totalorder %s90, %s93
      %p102 = scmp.eq.s32.totalorder %s17, 1
      %p103 = por %p101, %p102
      %p104 = scmp.ne.s32.totalorder %s93, %s94
      %p105 = scmp.eq.s32.totalorder %s17, 0
      %p106 = por %p104, %p105
      %p107 = scmp.ne.s32.totalorder %s93, %s94
      %p108 = scmp.eq.s32.totalorder %s18, 1
      %p109 = por %p107, %p108
      %p111 = scmp.ne.s32.totalorder %s94, %s110
      %p112 = scmp.eq.s32.totalorder %s18, 0
      %p113 = por %p111, %p112
      %p114 = scmp.le.s32.totalorder 1, %s12
      %p115 = scmp.lt.s32.totalorder %s12, 3
      %p116 = pnand %p114, %p115
      %p117 = pneg %p116
      // Predicated region
      $region9: #{tpu_custom_call.1} parent=5 // pred_check
        _
      $region10: #{tpu_custom_call.1} parent=5 // pred_check_branch
        %119 = sbr.rel (%p116) target = $region12
      $region11: #{tpu_custom_call.1} parent=5 // pred_region
        %s120 = ssub.s32 %s12, 1
        // Predicated region
        $region13: #{tpu_custom_call.1} parent=11 // pred_check
          %p121 = pneg %p59
        $region14: #{tpu_custom_call.1} parent=11 // pred_check_branch
          %123 = sbr.rel (%p121) target = $region16
        $region15: #{tpu_custom_call.1} parent=11 // pred_region
          _
        $region16: #{tpu_custom_call.1} parent=11 // pred_fallthru
          _
        // Predicated region
        $region17: #{tpu_custom_call.1} parent=11 // pred_check
          %p124 = pneg %p80
        $region18: #{tpu_custom_call.1} parent=11 // pred_check_branch
          %126 = sbr.rel (%p124) target = $region20
        $region19: #{tpu_custom_call.1} parent=11 // pred_region
          _
        $region20: #{tpu_custom_call.1} parent=11 // pred_fallthru
          _
      $region12: #{tpu_custom_call.1} parent=5 // pred_fallthru
        _
      %p127 = scmp.lt.s32.totalorder %s12, 2
      // Predicated region
      $region21: #{tpu_custom_call.1} parent=5 // pred_check
        %p128 = pneg %p127
      $region22: #{tpu_custom_call.1} parent=5 // pred_check_branch
        %130 = sbr.rel (%p128) target = $region24
      $region23: #{tpu_custom_call.1} parent=5 // pred_region
        // Predicated region
        $region25: #{tpu_custom_call.1} parent=23 // pred_check
          %p131 = pneg %p32
        $region26: #{tpu_custom_call.1} parent=23 // pred_check_branch
          %133 = sbr.rel (%p131) target = $region28
        $region27: #{tpu_custom_call.1} parent=23 // pred_region
          %s134 = smul.u32 2, %s12
          %p135 = scmp.lt.s32.totalorder %s134, 3
          %s136 = scalar_select %p135, %s134, 3
          %s137 = smul.addr %s136, 2
          %s138 = smul.addr %s137, 4
          %s139 = scalar_lea.vmem %s0, %s138
          %s140 = smul.u32 2, %s12
        $region28: #{tpu_custom_call.1} parent=23 // pred_fallthru
          _
      $region24: #{tpu_custom_call.1} parent=5 // pred_fallthru
        _
      %p141 = scmp.le.s32.totalorder 1, %s12
      %p142 = scmp.lt.s32.totalorder %s12, 3
      %p143 = pnand %p141, %p142
      %p144 = pneg %p143
      // Predicated region
      $region29: #{tpu_custom_call.1} parent=5 // pred_check
        _
      $region30: #{tpu_custom_call.1} parent=5 // pred_check_branch
        %146 = sbr.rel (%p143) target = $region32
      $region31: #{tpu_custom_call.1} parent=5 // pred_region
        %s147 = ssub.s32 %s12, 1
        %s148 = smul.u32 2, %s17
        %p149 = scmp.lt.s32.totalorder %s148, 3
        %s150 = scalar_select %p149, %s148, 3
        %s151 = smul.addr %s150, 2
        %s152 = smul.addr %s151, 4
        %s153 = scalar_lea.vmem %s0, %s152
        %p154 = pneg %p38
        %p155 = pneg %p35
        %p156 = pneg %p59
        %p157 = pneg %p56
        %p158 = pneg %p80
        %p159 = pneg %p77
        %p160 = pneg %p106
        %p161 = pneg %p103
        %s162 = sand.u32 %s93, 1
        %s163 = scalar_lea.sflag [#allocation3], %s162
        %s164 = sand.u32 %s93, 1
        %s165 = smul.addr %s164, 32
        %s166 = scalar_lea.vmem [#allocation2], %s165
        %s167 = smul.u32 2, %s17
        %p168 = scmp.lt.s32.totalorder %s167, 3
        %s169 = scalar_select %p168, %s167, 3
        %s170 = smul.addr %s169, 2
        %s171 = smul.addr %s170, 4
        %s172 = scalar_lea.vmem %s0, %s171
        %s173 = smul.u32 2, %s17
        %s174 = smul.u32 2, %s17
        %v175 = vld [vmem:[%s1] sm:$0xff]
        %v176 = vld [vmem:[%s1 + $0x8] sm:$0xff]
        %v177 = vld [vmem:[%s1 + $0x10] sm:$0xff]
        %v178 = vld [vmem:[%s1 + $0x18] sm:$0xff]
        %v179 = vld [vmem:[%s1 + $0x20] sm:$0xff]
        %v180 = vld [vmem:[%s1 + $0x28] sm:$0xff]
        %v181 = vld [vmem:[%s2] sm:$0xff]
        %v182 = vld [vmem:[%s2 + $0x8] sm:$0xff]
        %184 = vset.pattern.permute.xlu0 0
        %185 = vperm.xlu0 %184, %v181
        %v186 = vpop.permute.xlu0 %185
        %189 = vset.pattern.permute.xlu0 0
        %190 = vperm.xlu0 %189, %v182
        %v191 = vpop.permute.xlu0 %190
        loop: start=0, step=1, limit=2
        $region33: #{tpu_custom_call.1} parent=31 // loop_pre_header
          _
        $region34: #{tpu_custom_call.1} parent=31 // loop_header
          %s194 = sphi 0, %s198
          %p195 = scmp.ge.s32.totalorder %s194, 2
        $region35: #{tpu_custom_call.1} parent=31 // loop_header_branch
          %197 = sbr.rel (%p195) target = $region39
        $region36: #{tpu_custom_call.1} parent=31 // loop_body
          %s199 = smul.u32 %s194, 2
          %s200 = smul.addr %s199, 4
          %s201 = scalar_lea.vmem %s172, %s200
          %v202 = vld [vmem:[%s201] sm:$0xff]
          %v204 = vcombine.high %v202, %v202
          %vm205 = vcmask 31744
          %v207 = vsel %vm205, %v175, 0
          %v210 = vsel %vm205, %v176, 0
          %vm212 = vcmask 1043456
          %v213 = vsel %vm212, %v202, 0
          %v215 = vsel %vm212, %v204, 0
          %217 = vmatprep.subr.mxu0 0.0
          %218 = vmatpush1.msra.mxu0 0.0
          %219 = vmatprep.subr.mxu0 0.0
          %220 = vmatpush1.msra.mxu0 0.0
          %221 = vmatprep.subr.mxu0 0.0
          %222 = vmatpush1.msra.mxu0 0.0
          %223 = vmatprep.subr.mxu0 0.0
          %224 = vmatpush1.msra.mxu0 0.0
          %225 = vmatprep.subr.mxu0 0.0
          %226 = vmatpush1.msra.mxu0 0.0
          %227 = vmatprep.subr.mxu0 0.0
          %228 = vmatpush1.msra.mxu0 0.0
          %229 = vmatprep.subr.mxu0 0.0
          %230 = vmatpush1.msra.mxu0 0.0
          %231 = vmatprep.subr.mxu0 0.0
          %232 = vmatpush1.msra.mxu0 0.0
          %233 = vmatprep.subr.mxu0 0.0
          %234 = vmatpush1.msra.mxu0 0.0
          %235 = vmatprep.subr.mxu0 0.0
          %236 = vmatpush1.msra.mxu0 0.0
          %237 = vmatprep.subr.mxu0 0.0
          %238 = vmatpush1.msra.mxu0 0.0
          %239 = vmatprep.subr.mxu0 0.0
          %240 = vmatpush1.msra.mxu0 0.0
          %241 = vmatprep.subr.mxu0 0.0
          %242 = vmatpush1.msra.mxu0 0.0
          %243 = vmatprep.subr.mxu0 0.0
          %244 = vmatpush1.msra.mxu0 0.0
          %245 = vmatprep.subr.mxu0 0.0
          %246 = vmatpush1.msra.mxu0 0.0
          %247 = vmatprep.subr.mxu0 %v215
          %248 = vmatpush1.msra.mxu0 %v213
          %249 = vmatprep.subr.mxu0 0.0
          %250 = vmatpush2.msra.mxu0 0.0
          %251 = vmatprep.subr.mxu0 0.0
          %252 = vmatpush2.msra.mxu0 0.0
          %253 = vmatprep.subr.mxu0 0.0
          %254 = vmatpush2.msra.mxu0 0.0
          %255 = vmatprep.subr.mxu0 0.0
          %256 = vmatpush2.msra.mxu0 0.0
          %257 = vmatprep.subr.mxu0 0.0
          %258 = vmatpush2.msra.mxu0 0.0
          %259 = vmatprep.subr.mxu0 0.0
          %260 = vmatpush2.msra.mxu0 0.0
          %261 = vmatprep.subr.mxu0 0.0
          %262 = vmatpush2.msra.mxu0 0.0
          %263 = vmatprep.subr.mxu0 0.0
          %264 = vmatpush2.msra.mxu0 0.0
          %265 = vmatprep.subr.mxu0 0.0
          %266 = vmatpush2.msra.mxu0 0.0
          %267 = vmatprep.subr.mxu0 0.0
          %268 = vmatpush2.msra.mxu0 0.0
          %269 = vmatprep.subr.mxu0 0.0
          %270 = vmatpush2.msra.mxu0 0.0
          %271 = vmatprep.subr.mxu0 0.0
          %272 = vmatpush2.msra.mxu0 0.0
          %273 = vmatprep.subr.mxu0 0.0
          %274 = vmatpush2.msra.mxu0 0.0
          %275 = vmatprep.subr.mxu0 0.0
          %276 = vmatpush2.msra.mxu0 0.0
          %277 = vmatprep.subr.mxu0 0.0
          %278 = vmatpush2.msra.mxu0 0.0
          %279 = vmatprep.subr.mxu0 0.0
          %280 = vmatpush2.msra.mxu0 0.0
          %281 = vmatprep.mubr.f32.mxu0 0.0
          %282 = vmatmul.mubr.f32.gmra.mxu0 %v207
          %v283 = vpop.f32.mrf.mxu0
          %v284 = vadd.f32 0.0, %v283
          %v285 = vpop.f32.mrf.mxu0
          %v286 = vadd.f32 0.0, %v285
          %287 = vmatprep.mubr.f32.mxu0 0.0
          %288 = vmatmul.mubr.f32.gmra.mxu0 %v210
          %v289 = vpop.f32.mrf.mxu0
          %v290 = vadd.f32 0.0, %v289
          %v291 = vpop.f32.mrf.mxu0
          %v292 = vadd.f32 0.0, %v291
          %293 = vdwg.mxu0
          %v294 = vadd.f32 %v186, %v284
          %v295 = vadd.f32 %v186, %v286
          %v296 = vadd.f32 %v191, %v290
          %v297 = vadd.f32 %v191, %v292
          %298 = vrot.lane.b32.xlu0 %v202, 112
          %v299 = vpop.permute.xlu0 %298
          %300 = vrot.lane.b32.xlu0 %v204, 112
          %v301 = vpop.permute.xlu0 %300
          %vm302 = vcmask 916480
          %v303 = vsel %vm302, %v299, %v301
          %v305 = vsel %vm205, %v177, 0
          %v308 = vsel %vm205, %v178, 0
          %v310 = vsel %vm212, %v303, 0
          %v312 = vsel %vm212, %v301, 0
          %314 = vmatprep.subr.mxu0 0.0
          %315 = vmatpush1.msra.mxu0 0.0
          %316 = vmatprep.subr.mxu0 0.0
          %317 = vmatpush1.msra.mxu0 0.0
          %318 = vmatprep.subr.mxu0 0.0
          %319 = vmatpush1.msra.mxu0 0.0
          %320 = vmatprep.subr.mxu0 0.0
          %321 = vmatpush1.msra.mxu0 0.0
          %322 = vmatprep.subr.mxu0 0.0
          %323 = vmatpush1.msra.mxu0 0.0
          %324 = vmatprep.subr.mxu0 0.0
          %325 = vmatpush1.msra.mxu0 0.0
          %326 = vmatprep.subr.mxu0 0.0
          %327 = vmatpush1.msra.mxu0 0.0
          %328 = vmatprep.subr.mxu0 0.0
          %329 = vmatpush1.msra.mxu0 0.0
          %330 = vmatprep.subr.mxu0 0.0
          %331 = vmatpush1.msra.mxu0 0.0
          %332 = vmatprep.subr.mxu0 0.0
          %333 = vmatpush1.msra.mxu0 0.0
          %334 = vmatprep.subr.mxu0 0.0
          %335 = vmatpush1.msra.mxu0 0.0
          %336 = vmatprep.subr.mxu0 0.0
          %337 = vmatpush1.msra.mxu0 0.0
          %338 = vmatprep.subr.mxu0 0.0
          %339 = vmatpush1.msra.mxu0 0.0
          %340 = vmatprep.subr.mxu0 0.0
          %341 = vmatpush1.msra.mxu0 0.0
          %342 = vmatprep.subr.mxu0 0.0
          %343 = vmatpush1.msra.mxu0 0.0
          %344 = vmatprep.subr.mxu0 %v312
          %345 = vmatpush1.msra.mxu0 %v310
          %346 = vmatprep.subr.mxu0 0.0
          %347 = vmatpush2.msra.mxu0 0.0
          %348 = vmatprep.subr.mxu0 0.0
          %349 = vmatpush2.msra.mxu0 0.0
          %350 = vmatprep.subr.mxu0 0.0
          %351 = vmatpush2.msra.mxu0 0.0
          %352 = vmatprep.subr.mxu0 0.0
          %353 = vmatpush2.msra.mxu0 0.0
          %354 = vmatprep.subr.mxu0 0.0
          %355 = vmatpush2.msra.mxu0 0.0
          %356 = vmatprep.subr.mxu0 0.0
          %357 = vmatpush2.msra.mxu0 0.0
          %358 = vmatprep.subr.mxu0 0.0
          %359 = vmatpush2.msra.mxu0 0.0
          %360 = vmatprep.subr.mxu0 0.0
          %361 = vmatpush2.msra.mxu0 0.0
          %362 = vmatprep.subr.mxu0 0.0
          %363 = vmatpush2.msra.mxu0 0.0
          %364 = vmatprep.subr.mxu0 0.0
          %365 = vmatpush2.msra.mxu0 0.0
          %366 = vmatprep.subr.mxu0 0.0
          %367 = vmatpush2.msra.mxu0 0.0
          %368 = vmatprep.subr.mxu0 0.0
          %369 = vmatpush2.msra.mxu0 0.0
          %370 = vmatprep.subr.mxu0 0.0
          %371 = vmatpush2.msra.mxu0 0.0
          %372 = vmatprep.subr.mxu0 0.0
          %373 = vmatpush2.msra.mxu0 0.0
          %374 = vmatprep.subr.mxu0 0.0
          %375 = vmatpush2.msra.mxu0 0.0
          %376 = vmatprep.subr.mxu0 0.0
          %377 = vmatpush2.msra.mxu0 0.0
          %378 = vmatprep.mubr.f32.mxu0 0.0
          %379 = vmatmul.mubr.f32.gmra.mxu0 %v305
          %v380 = vpop.f32.mrf.mxu0
          %v381 = vadd.f32 0.0, %v380
          %v382 = vpop.f32.mrf.mxu0
          %v383 = vadd.f32 0.0, %v382
          %384 = vmatprep.mubr.f32.mxu0 0.0
          %385 = vmatmul.mubr.f32.gmra.mxu0 %v308
          %v386 = vpop.f32.mrf.mxu0
          %v387 = vadd.f32 0.0, %v386
          %v388 = vpop.f32.mrf.mxu0
          %v389 = vadd.f32 0.0, %v388
          %390 = vdwg.mxu0
          %v391 = vadd.f32 %v294, %v381
          %v392 = vadd.f32 %v295, %v383
          %v393 = vadd.f32 %v296, %v387
          %v394 = vadd.f32 %v297, %v389
          %395 = vrot.lane.b32.xlu0 %v202, 96
          %v396 = vpop.permute.xlu0 %395
          %397 = vrot.lane.b32.xlu0 %v204, 96
          %v398 = vpop.permute.xlu0 %397
          %vm399 = vcmask 785408
          %v400 = vsel %vm399, %v396, %v398
          %v402 = vsel %vm205, %v179, 0
          %v405 = vsel %vm205, %v180, 0
          %v407 = vsel %vm212, %v400, 0
          %v409 = vsel %vm212, %v398, 0
          %411 = vmatprep.subr.mxu0 0.0
          %412 = vmatpush1.msra.mxu0 0.0
          %413 = vmatprep.subr.mxu0 0.0
          %414 = vmatpush1.msra.mxu0 0.0
          %415 = vmatprep.subr.mxu0 0.0
          %416 = vmatpush1.msra.mxu0 0.0
          %417 = vmatprep.subr.mxu0 0.0
          %418 = vmatpush1.msra.mxu0 0.0
          %419 = vmatprep.subr.mxu0 0.0
          %420 = vmatpush1.msra.mxu0 0.0
          %421 = vmatprep.subr.mxu0 0.0
          %422 = vmatpush1.msra.mxu0 0.0
          %423 = vmatprep.subr.mxu0 0.0
          %424 = vmatpush1.msra.mxu0 0.0
          %425 = vmatprep.subr.mxu0 0.0
          %426 = vmatpush1.msra.mxu0 0.0
          %427 = vmatprep.subr.mxu0 0.0
          %428 = vmatpush1.msra.mxu0 0.0
          %429 = vmatprep.subr.mxu0 0.0
          %430 = vmatpush1.msra.mxu0 0.0
          %431 = vmatprep.subr.mxu0 0.0
          %432 = vmatpush1.msra.mxu0 0.0
          %433 = vmatprep.subr.mxu0 0.0
          %434 = vmatpush1.msra.mxu0 0.0
          %435 = vmatprep.subr.mxu0 0.0
          %436 = vmatpush1.msra.mxu0 0.0
          %437 = vmatprep.subr.mxu0 0.0
          %438 = vmatpush1.msra.mxu0 0.0
          %439 = vmatprep.subr.mxu0 0.0
          %440 = vmatpush1.msra.mxu0 0.0
          %441 = vmatprep.subr.mxu0 %v409
          %442 = vmatpush1.msra.mxu0 %v407
          %443 = vmatprep.subr.mxu0 0.0
          %444 = vmatpush2.msra.mxu0 0.0
          %445 = vmatprep.subr.mxu0 0.0
          %446 = vmatpush2.msra.mxu0 0.0
          %447 = vmatprep.subr.mxu0 0.0
          %448 = vmatpush2.msra.mxu0 0.0
          %449 = vmatprep.subr.mxu0 0.0
          %450 = vmatpush2.msra.mxu0 0.0
          %451 = vmatprep.subr.mxu0 0.0
          %452 = vmatpush2.msra.mxu0 0.0
          %453 = vmatprep.subr.mxu0 0.0
          %454 = vmatpush2.msra.mxu0 0.0
          %455 = vmatprep.subr.mxu0 0.0
          %456 = vmatpush2.msra.mxu0 0.0
          %457 = vmatprep.subr.mxu0 0.0
          %458 = vmatpush2.msra.mxu0 0.0
          %459 = vmatprep.subr.mxu0 0.0
          %460 = vmatpush2.msra.mxu0 0.0
          %461 = vmatprep.subr.mxu0 0.0
          %462 = vmatpush2.msra.mxu0 0.0
          %463 = vmatprep.subr.mxu0 0.0
          %464 = vmatpush2.msra.mxu0 0.0
          %465 = vmatprep.subr.mxu0 0.0
          %466 = vmatpush2.msra.mxu0 0.0
          %467 = vmatprep.subr.mxu0 0.0
          %468 = vmatpush2.msra.mxu0 0.0
          %469 = vmatprep.subr.mxu0 0.0
          %470 = vmatpush2.msra.mxu0 0.0
          %471 = vmatprep.subr.mxu0 0.0
          %472 = vmatpush2.msra.mxu0 0.0
          %473 = vmatprep.subr.mxu0 0.0
          %474 = vmatpush2.msra.mxu0 0.0
          %475 = vmatprep.mubr.f32.mxu0 0.0
          %476 = vmatmul.mubr.f32.gmra.mxu0 %v402
          %v477 = vpop.f32.mrf.mxu0
          %v478 = vadd.f32 0.0, %v477
          %v479 = vpop.f32.mrf.mxu0
          %v480 = vadd.f32 0.0, %v479
          %481 = vmatprep.mubr.f32.mxu0 0.0
          %482 = vmatmul.mubr.f32.gmra.mxu0 %v405
          %v483 = vpop.f32.mrf.mxu0
          %v484 = vadd.f32 0.0, %v483
          %v485 = vpop.f32.mrf.mxu0
          %v486 = vadd.f32 0.0, %v485
          %487 = vdwg.mxu0
          %v488 = vadd.f32 %v391, %v478
          %v489 = vadd.f32 %v392, %v480
          %v490 = vadd.f32 %v393, %v484
          %v491 = vadd.f32 %v394, %v486
          %v492 = vxor.u32 %v490, 2147483648
          %v493 = vxor.u32 %v491, 2147483648
          %v494 = vmul.f32 %v492, 1.442695
          %v495 = vpow.pop %v494
          %v496 = vmul.f32 %v493, 1.442695
          %v497 = vpow.pop %v496
          %v498 = vadd.f32 %v495, 1.0
          %v499 = vadd.f32 %v497, 1.0
          %v500 = vrcp.pop %v498
          %v501 = vmul.f32 1.0, %v500
          %v502 = vrcp.pop %v499
          %v503 = vmul.f32 1.0, %v502
          %v504 = vmul.f32 %v488, %v501
          %v505 = vmul.f32 %v489, %v503
          %s506 = smul.addr %s199, 8
          %s507 = scalar_lea.vmem %s166, %s506 [#allocation2]
          %508 = vst [vmem:[%s507] sm:$0xff] %v504
          %509 = vst.msk [vmem:[%s507 + $0x8] sm:$0xff] %vm399, %v505
        $region37: #{tpu_custom_call.1} parent=31 // loop_footer
          %s198 = sadd.s32 1, %s194
        $region38: #{tpu_custom_call.1} parent=31 // loop_footer_branch
          %193 = sbr.rel target = $region34
        $region39: #{tpu_custom_call.1} parent=31 // loop_exit
          _
        %s510 = sand.u32 %s93, 1
        %s511 = scalar_lea.sflag [#allocation3], %s510
        %s512 = sand.u32 %s93, 1
        %s513 = smul.addr %s512, 32
        %s514 = scalar_lea.vmem [#allocation2], %s513
        // Predicated region
        $region40: #{tpu_custom_call.1} parent=31 // pred_check
          %p515 = pneg %p103
        $region41: #{tpu_custom_call.1} parent=31 // pred_check_branch
          %517 = sbr.rel (%p515) target = $region43
        $region42: #{tpu_custom_call.1} parent=31 // pred_region
          %s518 = smul.u32 2, %s17
          %s520 = ssub.s32 512, 512
          %521 = vsyncadd %s511, %s520
          %s522 = smul.addr %s518, 2
          %s523 = smul.addr %s522, 128
          %s524 = scalar_lea.hbm %s3, %s523
          %s525 = sshll.u32 %s514, 4
          %s526 = int_to_ptr.vmem [resolvable:$true] %s525
          %531 = dma.vmem_to_hbm [thread:$0]  %s526, 512, %s524, %s511, 256, 256, 16
        $region43: #{tpu_custom_call.1} parent=31 // pred_fallthru
          _
      $region32: #{tpu_custom_call.1} parent=5 // pred_fallthru
        _
      %p532 = scmp.le.s32.totalorder 2, %s12
      // Predicated region
      $region44: #{tpu_custom_call.1} parent=5 // pred_check
        %p533 = pneg %p532
      $region45: #{tpu_custom_call.1} parent=5 // pred_check_branch
        %535 = sbr.rel (%p533) target = $region47
      $region46: #{tpu_custom_call.1} parent=5 // pred_region
        %s536 = ssub.s32 %s12, 2
        // Predicated region
        $region48: #{tpu_custom_call.1} parent=46 // pred_check
          %p537 = pneg %p109
        $region49: #{tpu_custom_call.1} parent=46 // pred_check_branch
          %539 = sbr.rel (%p537) target = $region51
        $region50: #{tpu_custom_call.1} parent=46 // pred_region
          %s540 = sand.u32 %s94, 1
          %s541 = scalar_lea.sflag [#allocation3], %s540
          %s542 = sand.u32 %s94, 1
          %s543 = smul.addr %s542, 32
          %s544 = scalar_lea.vmem [#allocation2], %s543
          %545 = dma.done %s541, 512
        $region51: #{tpu_custom_call.1} parent=46 // pred_fallthru
          _
      $region47: #{tpu_custom_call.1} parent=5 // pred_fallthru
        _
    $region6: #{tpu_custom_call.1} parent=1 // loop_footer
      %s16 = sadd.s32 1, %s12
    $region7: #{tpu_custom_call.1} parent=1 // loop_footer_branch
      %11 = sbr.rel target = $region3
    $region8: #{tpu_custom_call.1} parent=1 // loop_exit
      _
    %546 = vsyncpa [#allocation3], 1
    %s547 = scalar_lea.sflag [#allocation3], 1
    %548 = vsyncpa %s547, 1

</llo_original>
